<compile_context>
chip_gen: v6e
topology: v6e:2x2x1
jax: 0.10.0
libtpu: 0.0.40
codegen_flags: <defaults>
</compile_context>

<pallas_src>
import jax
import jax.numpy as jnp
from jax.experimental import pallas as pl
from jax.experimental.pallas import tpu as pltpu


# ----------------------------------------------------------------------------
# Kernels
# ----------------------------------------------------------------------------
def _trunk_kernel(x_ref, w1_ref, b1_ref, w2_ref, b2_ref, z_ref):
    """layer1 (Linear + exact GELU) + layer2 (Linear) + L2-normalize.

    Grid = (batch_tiles,).  bf16 MXU operands, f32 accumulation; all
    elementwise math in f32.  Writes the normalized bottleneck activation z
    as bf16 (the dtype consumed by the last-layer matmul).
    """
    # layer1: Linear(in_dim -> hidden_dim)
    h = jnp.dot(x_ref[...], w1_ref[...], preferred_element_type=jnp.float32)
    h = h + b1_ref[...]
    # exact erf-based GELU (torch nn.GELU default)
    h = 0.5 * h * (1.0 + jax.lax.erf(h * jnp.float32(0.7071067811865476)))

    # layer2: Linear(hidden_dim -> bottleneck_dim)
    z = jnp.dot(h.astype(jnp.bfloat16), w2_ref[...],
                preferred_element_type=jnp.float32)
    z = z + b2_ref[...]

    # F.normalize(z, dim=-1, p=2), eps=1e-12 (torch default):
    #   z / max(||z||, eps) == z * rsqrt(max(||z||^2, eps^2))   (single EUP op)
    ssq = jnp.sum(z * z, axis=-1, keepdims=True)
    inv = jax.lax.rsqrt(jnp.maximum(ssq, jnp.float32(1e-24)))
    z_ref[...] = (z * inv).astype(z_ref.dtype)


def _last_layer_kernel(z_ref, w3_ref, o_ref):
    """Bias-free last layer, one (batch_tile x out_dim_tile) output block."""
    o_ref[...] = jnp.dot(z_ref[...], w3_ref[...],
                         preferred_element_type=jnp.float32).astype(o_ref.dtype)


# ----------------------------------------------------------------------------
# Wrapper
# ----------------------------------------------------------------------------
def _round_up(n, m):
    return ((n + m - 1) // m) * m


def _invariant_spec(block_shape, index_map):
    """BlockSpec for a grid-invariant operand.

    Constant index_map => the block is DMA'd from HBM only once; buffer_count=1
    additionally drops the redundant second pipeline buffer (saves ~W1-sized
    VMEM at real DINO shapes, most valuable on v7x's 64 MiB VMEM).
    """
    try:
        return pl.BlockSpec(block_shape, index_map, pipeline_mode=pl.Buffered(1))
    except Exception:  # older jax without pipeline_mode/Buffered: still correct.
        return pl.BlockSpec(block_shape, index_map)


def dino_projection_head(x, w1, b1, w2, b2, w3, *,
                         tile_b=256, tile_n=None,
                         out_dtype=jnp.float32,
                         vmem_budget_bytes=40 * 1024 * 1024,
                         vmem_limit_bytes=None):
    """DINO projection head forward.

    x: [B, in_dim] f32.  Weights stored (fan_in, fan_out); biases (fan_out,)
    or (1, fan_out).  MXU operands are bf16, accumulation and elementwise math
    are f32.  Output dtype selectable (f32 default; bf16 halves writeback and
    output-tile VMEM — gate on downstream tolerance).

    tile_b: batch tile (256 default: fills the 256-tall MXU on v6e/v7x; 128 is
            fine on v5e if VMEM is tight).
    tile_n: out_dim streaming tile (multiple of 128).  If None, derived from
            vmem_budget_bytes (default 40 MiB — safe vs v7x's 64 MiB VMEM;
            raise the budget on v5e/v6e's 128 MiB for slightly larger tiles).
    """
    B, in_dim = x.shape
    hidden_dim = w1.shape[1]
    bottleneck_dim = w2.shape[1]
    out_dim = w3.shape[1]
    out_bytes = jnp.dtype(out_dtype).itemsize

    b1 = jnp.asarray(b1, jnp.float32).reshape(1, hidden_dim)
    b2 = jnp.asarray(b2, jnp.float32).reshape(1, bottleneck_dim)

    # ---- tile derivation ----------------------------------------------------
    tb = min(tile_b, _round_up(B, 16))          # multiple of 16 (bf16 packing)
    B_pad = _round_up(B, tb)

    n_pad0 = _round_up(out_dim, 128)
    if tile_n is None:
        # Budget: 2*(tb*K*2) z + 2*(K*tn*2) W3 + 2*(tb*tn*out_bytes) out <= budget
        denom = 4 * bottleneck_dim + 2 * tb * out_bytes
        tn = (vmem_budget_bytes - 4 * tb * bottleneck_dim) // max(denom, 1)
        tn = max(int(tn), 128)
        # Round down to a power-of-two multiple of 128 (clean tiling of the
        # power-of-two out_dims DINO uses), cap at 16384.
        p = 128
        while p * 2 <= min(tn, 16384):
            p *= 2
        tn = p
    else:
        tn = _round_up(tile_n, 128)
    tn = min(tn, n_pad0)
    N_pad = _round_up(out_dim, tn)

    # ---- padding + MXU dtype policy ----------------------------------------
    x_p = x if B_pad == B else jnp.pad(x, ((0, B_pad - B), (0, 0)))
    w3_p = w3 if N_pad == out_dim else jnp.pad(w3, ((0, 0), (0, N_pad - out_dim)))

    x_p = x_p.astype(jnp.bfloat16)
    w1 = jnp.asarray(w1, jnp.bfloat16)
    w2 = jnp.asarray(w2, jnp.bfloat16)
    w3_p = w3_p.astype(jnp.bfloat16)

    # ---- kernel 1: MLP trunk + L2 normalize ---------------------------------
    trunk_vmem = (2 * tb * in_dim * 2                     # x (double-buffered)
                  + 2 * in_dim * hidden_dim * 2           # w1 (conservative x2)
                  + 2 * hidden_dim * 4                    # b1
                  + 2 * hidden_dim * bottleneck_dim * 2   # w2
                  + 2 * bottleneck_dim * 4                # b2
                  + 2 * tb * bottleneck_dim * 2           # z out
                  + tb * hidden_dim * 4                   # live h (f32)
                  + tb * bottleneck_dim * 4)              # live z (f32)
    trunk_limit = vmem_limit_bytes or max(32 * 1024 * 1024,
                                          trunk_vmem + (8 << 20))

    z = pl.pallas_call(
        _trunk_kernel,
        out_shape=jax.ShapeDtypeStruct((B_pad, bottleneck_dim), jnp.bfloat16),
        grid_spec=pltpu.PrefetchScalarGridSpec(
            num_scalar_prefetch=0,
            grid=(B_pad // tb,),
            in_specs=[
                pl.BlockSpec((tb, in_dim), lambda i: (i, 0)),
                _invariant_spec((in_dim, hidden_dim), lambda i: (0, 0)),
                _invariant_spec((1, hidden_dim), lambda i: (0, 0)),
                _invariant_spec((hidden_dim, bottleneck_dim), lambda i: (0, 0)),
                _invariant_spec((1, bottleneck_dim), lambda i: (0, 0)),
            ],
            out_specs=pl.BlockSpec((tb, bottleneck_dim), lambda i: (i, 0)),
        ),
        compiler_params=pltpu.CompilerParams(
            dimension_semantics=("parallel",),
            vmem_limit_bytes=trunk_limit,
        ),
        cost_estimate=pl.CostEstimate(
            flops=2 * B_pad * (in_dim * hidden_dim
                               + hidden_dim * bottleneck_dim),
            transcendentals=B_pad * (hidden_dim + 1),   # erf + rsqrt per row
            bytes_accessed=(B_pad * in_dim * 2 + in_dim * hidden_dim * 2
                            + hidden_dim * 4 + hidden_dim * bottleneck_dim * 2
                            + bottleneck_dim * 4 + B_pad * bottleneck_dim * 2),
        ),
    )(x_p, w1, b1, w2, b2)

    # ---- kernel 2: bias-free last layer, W3 streamed over out_dim -----------
    n_i = B_pad // tb
    n_j = N_pad // tn
    last_vmem = (2 * tb * bottleneck_dim * 2        # z tile
                 + 2 * bottleneck_dim * tn * 2      # W3 tile (double-buffered)
                 + 2 * tb * tn * out_bytes)         # output tile
    last_limit = vmem_limit_bytes or max(32 * 1024 * 1024,
                                         last_vmem + (8 << 20))

    out = pl.pallas_call(
        _last_layer_kernel,
        out_shape=jax.ShapeDtypeStruct((B_pad, N_pad), out_dtype),
        grid_spec=pltpu.PrefetchScalarGridSpec(
            num_scalar_prefetch=0,
            # out_dim OUTER, batch INNER: each W3 slab is read from HBM exactly
            # once and stays VMEM-resident across the inner batch sweep
            # (previously W3 was re-streamed once per batch tile).
            grid=(n_j, n_i),
            in_specs=[
                pl.BlockSpec((tb, bottleneck_dim), lambda j, i: (i, 0)),
                pl.BlockSpec((bottleneck_dim, tn), lambda j, i: (0, j)),
            ],
            out_specs=pl.BlockSpec((tb, tn), lambda j, i: (i, j)),
        ),
        compiler_params=pltpu.CompilerParams(
            # No carried scratch => both axes can be megacore-parallel (v7x):
            # the two TensorCores split the W3 stream even when n_i == 1.
            dimension_semantics=("parallel", "parallel"),
            vmem_limit_bytes=last_limit,
        ),
        cost_estimate=pl.CostEstimate(
            flops=2 * B_pad * bottleneck_dim * N_pad,
            transcendentals=0,
            bytes_accessed=(bottleneck_dim * N_pad * 2            # W3 once
                            + n_j * B_pad * bottleneck_dim * 2    # z per j tile
                            + B_pad * N_pad * out_bytes),          # output
        ),
    )(z, w3_p)

    return out[:B, :out_dim]


# ----------------------------------------------------------------------------
# Pure-JAX reference (same bf16-operand / f32-accumulate policy)
# ----------------------------------------------------------------------------
def reference_forward(x, w1, b1, w2, b2, w3):
    bf = jnp.bfloat16
    h = jnp.dot(x.astype(bf), w1.astype(bf), preferred_element_type=jnp.float32)
    h = h + b1.reshape(1, -1)
    h = 0.5 * h * (1.0 + jax.lax.erf(h * jnp.float32(0.7071067811865476)))
    z = jnp.dot(h.astype(bf), w2.astype(bf), preferred_element_type=jnp.float32)
    z = z + b2.reshape(1, -1)
    ssq = jnp.sum(z * z, axis=-1, keepdims=True)
    z = z * jax.lax.rsqrt(jnp.maximum(ssq, jnp.float32(1e-24)))
    return jnp.dot(z.astype(bf), w3.astype(bf), preferred_element_type=jnp.float32)


if __name__ == "__main__":
    # Small dims consistent with the module's Linear stack, chosen so batch
    # padding and both grid axes of the last-layer kernel are exercised.
    B, in_dim, hidden_dim, bottleneck_dim, out_dim = 192, 64, 128, 64, 384

    key = jax.random.PRNGKey(0)
    kx, k1, kb1, k2, kb2, k3 = jax.random.split(key, 6)

    x = jax.random.normal(kx, (B, in_dim), dtype=jnp.float32)

    # Deterministic parameter init (uniform, ~= PyTorch Linear default scale).
    def uinit(k, shape, fan_in):
        bound = 1.0 / jnp.sqrt(jnp.float32(fan_in))
        return jax.random.uniform(k, shape, jnp.float32, -bound, bound)

    w1 = uinit(k1, (in_dim, hidden_dim), in_dim)
    b1 = uinit(kb1, (1, hidden_dim), in_dim)
    w2 = uinit(k2, (hidden_dim, bottleneck_dim), hidden_dim)
    b2 = uinit(kb2, (1, bottleneck_dim), hidden_dim)

    # last_layer weight: torch shape (out_dim, bottleneck_dim), row-normalized
    # once at init (norm_last_layer=True), then transposed to (fan_in, fan_out).
    # TODO(synk): the in-training re-normalization before each forward is a
    # training-only side effect and is intentionally not modeled in the kernel.
    w3_t = uinit(k3, (out_dim, bottleneck_dim), bottleneck_dim)
    w3_t = w3_t / jnp.maximum(
        jnp.sqrt(jnp.sum(w3_t * w3_t, axis=1, keepdims=True)), 1e-12)
    w3 = w3_t.T

    ref = reference_forward(x, w1, b1, w2, b2, w3)

    # 1) small explicit tiles: batch padding 192->256, 2 batch tiles x 3 out tiles.
    out_small = dino_projection_head(x, w1, b1, w2, b2, w3,
                                     tile_b=128, tile_n=128)
    out_small = jax.block_until_ready(out_small)
    assert out_small.shape == (B, out_dim)
    assert jnp.allclose(out_small, ref, atol=2e-3, rtol=2e-3), \
        "mismatch vs reference (small tiles)"

    # 2) default (performance) tiling path: tb=min(256, B), budget-derived tn.
    out_def = dino_projection_head(x, w1, b1, w2, b2, w3)
    out_def = jax.block_until_ready(out_def)
    assert out_def.shape == (B, out_dim)
    assert jnp.allclose(out_def, ref, atol=2e-3, rtol=2e-3), \
        "mismatch vs reference (default tiles)"

    print("KERNEL_OK")
</pallas_src>

<mosaic_0001>
module attributes {stable_mosaic.version = 11 : i64} {
  func.func @_trunk_kernel(%arg0: i32, %arg1: memref<128x64xbf16, #tpu.memory_space<vmem>>, %arg2: memref<64x128xbf16, #tpu.memory_space<vmem>>, %arg3: memref<1x128xf32, #tpu.memory_space<vmem>>, %arg4: memref<128x64xbf16, #tpu.memory_space<vmem>>, %arg5: memref<1x64xf32, #tpu.memory_space<vmem>>, %arg6: memref<128x64xbf16, #tpu.memory_space<vmem>>) attributes {dimension_semantics = [#tpu.dimension_semantics<parallel>], iteration_bounds = array<i64: 2>, scalar_prefetch = 0 : i64, scratch_operands = 0 : i64, tpu.core_type = #tpu.core_type<tc>, window_params = [{transform_indices = @transform_0, window_bounds = array<i64: 128, 64>}, {pipeline_mode = #tpu.pipeline_mode<synchronous>, transform_indices = @transform_1, window_bounds = array<i64: 64, 128>}, {pipeline_mode = #tpu.pipeline_mode<synchronous>, transform_indices = @transform_2, window_bounds = array<i64: 1, 128>}, {pipeline_mode = #tpu.pipeline_mode<synchronous>, transform_indices = @transform_3, window_bounds = array<i64: 128, 64>}, {pipeline_mode = #tpu.pipeline_mode<synchronous>, transform_indices = @transform_4, window_bounds = array<i64: 1, 64>}, {transform_indices = @transform_5, window_bounds = array<i64: 128, 64>}]} {
    %c0 = arith.constant 0 : index
    %c0_0 = arith.constant 0 : index
    %0 = vector.load %arg1[%c0, %c0_0] : memref<128x64xbf16, #tpu.memory_space<vmem>>, vector<128x64xbf16>
    %c0_1 = arith.constant 0 : index
    %c0_2 = arith.constant 0 : index
    %1 = vector.load %arg2[%c0_1, %c0_2] : memref<64x128xbf16, #tpu.memory_space<vmem>>, vector<64x128xbf16>
    %cst = arith.constant dense<0.000000e+00> : vector<128x128xf32>
    %2 = tpu.matmul %0, %1, %cst {dimension_numbers = #tpu.dot_dimension_numbers<[1], [0], [0], [1], [0, 0, 1, 1], [], []>} : vector<128x64xbf16>, vector<64x128xbf16>, vector<128x128xf32> -> vector<128x128xf32>
    %c0_3 = arith.constant 0 : index
    %c0_4 = arith.constant 0 : index
    %3 = vector.load %arg3[%c0_3, %c0_4] : memref<1x128xf32, #tpu.memory_space<vmem>>, vector<1x128xf32>
    %4 = vector.broadcast %3 : vector<1x128xf32> to vector<128x128xf32>
    %5 = arith.addf %2, %4 : vector<128x128xf32>
    %cst_5 = arith.constant 5.000000e-01 : f32
    %6 = vector.broadcast %cst_5 : f32 to vector<128x128xf32>
    %7 = arith.mulf %6, %5 : vector<128x128xf32>
    %cst_6 = arith.constant 0.707106769 : f32
    %8 = vector.broadcast %cst_6 : f32 to vector<128x128xf32>
    %9 = arith.mulf %5, %8 : vector<128x128xf32>
    %10 = math.erf %9 : vector<128x128xf32>
    %cst_7 = arith.constant 1.000000e+00 : f32
    %11 = vector.broadcast %cst_7 : f32 to vector<128x128xf32>
    %12 = arith.addf %11, %10 : vector<128x128xf32>
    %13 = arith.mulf %7, %12 : vector<128x128xf32>
    %14 = arith.truncf %13 : vector<128x128xf32> to vector<128x128xbf16>
    %c0_8 = arith.constant 0 : index
    %c0_9 = arith.constant 0 : index
    %15 = vector.load %arg4[%c0_8, %c0_9] : memref<128x64xbf16, #tpu.memory_space<vmem>>, vector<128x64xbf16>
    %cst_10 = arith.constant dense<0.000000e+00> : vector<128x64xf32>
    %16 = tpu.matmul %14, %15, %cst_10 {dimension_numbers = #tpu.dot_dimension_numbers<[1], [0], [0], [1], [0, 0, 1, 1], [], []>} : vector<128x128xbf16>, vector<128x64xbf16>, vector<128x64xf32> -> vector<128x64xf32>
    %c0_11 = arith.constant 0 : index
    %c0_12 = arith.constant 0 : index
    %17 = vector.load %arg5[%c0_11, %c0_12] : memref<1x64xf32, #tpu.memory_space<vmem>>, vector<1x64xf32>
    %18 = vector.broadcast %17 : vector<1x64xf32> to vector<128x64xf32>
    %19 = arith.addf %16, %18 : vector<128x64xf32>
    %20 = arith.mulf %19, %19 : vector<128x64xf32>
    %cst_13 = arith.constant dense<0.000000e+00> : vector<128xf32>
    %21 = vector.multi_reduction <add>, %20, %cst_13 [1] : vector<128x64xf32> to vector<128xf32>
    %22 = vector.shape_cast %21 : vector<128xf32> to vector<128x1xf32>
    %cst_14 = arith.constant 1.000000e-24 : f32
    %23 = vector.broadcast %cst_14 : f32 to vector<128x1xf32>
    %24 = arith.maximumf %22, %23 : vector<128x1xf32>
    %25 = math.rsqrt %24 : vector<128x1xf32>
    %26 = vector.broadcast %25 : vector<128x1xf32> to vector<128x64xf32>
    %27 = arith.mulf %19, %26 : vector<128x64xf32>
    %28 = arith.truncf %27 : vector<128x64xf32> to vector<128x64xbf16>
    %c0_15 = arith.constant 0 : index
    %c0_16 = arith.constant 0 : index
    %29 = vector.load %arg6[%c0_15, %c0_16] : memref<128x64xbf16, #tpu.memory_space<vmem>>, vector<128x64xbf16>
    tpu.vector_store %arg6[%c0_15, %c0_16], %28 {strides = array<i32>} : memref<128x64xbf16, #tpu.memory_space<vmem>>, vector<128x64xbf16>,
    return
  }
  func.func @transform_0(%arg0: i32) -> (i32, i32) {
    %c0_i32 = arith.constant 0 : i32
    %c0_i32_0 = arith.constant 0 : i32
    return %arg0, %c0_i32 : i32, i32
  }
  func.func @transform_1(%arg0: i32) -> (i32, i32) {
    %c0_i32 = arith.constant 0 : i32
    %c0_i32_0 = arith.constant 0 : i32
    %c0_i32_1 = arith.constant 0 : i32
    return %c0_i32, %c0_i32_0 : i32, i32
  }
  func.func @transform_2(%arg0: i32) -> (i32, i32) {
    %c0_i32 = arith.constant 0 : i32
    %c0_i32_0 = arith.constant 0 : i32
    %c0_i32_1 = arith.constant 0 : i32
    return %c0_i32, %c0_i32_0 : i32, i32
  }
  func.func @transform_3(%arg0: i32) -> (i32, i32) {
    %c0_i32 = arith.constant 0 : i32
    %c0_i32_0 = arith.constant 0 : i32
    %c0_i32_1 = arith.constant 0 : i32
    return %c0_i32, %c0_i32_0 : i32, i32
  }
  func.func @transform_4(%arg0: i32) -> (i32, i32) {
    %c0_i32 = arith.constant 0 : i32
    %c0_i32_0 = arith.constant 0 : i32
    %c0_i32_1 = arith.constant 0 : i32
    return %c0_i32, %c0_i32_0 : i32, i32
  }
  func.func @transform_5(%arg0: i32) -> (i32, i32) {
    %c0_i32 = arith.constant 0 : i32
    %c0_i32_0 = arith.constant 0 : i32
    return %arg0, %c0_i32 : i32, i32
  }
}

</mosaic_0001>

<llo_original>
// kernel: tpu_custom_call.1
$region0: #{tpu_custom_call.1}
  #allocation0 [shape = 'u32[]', space=smem, size = 0x4, offset = 0x4, fixed_abs, tag = 'smem constant byte address 0x4 - core index']
  #allocation1 [shape = 'u32[144,128]{1,0:T(1,128)}', space=vmem, size = 0x12000, scoped, tag = 'internal scratch']
  %s0 = inlined_call_operand.vmem [shape: bf16[256,64], index: 0, kind: input, shape index: {}]
  %s1 = inlined_call_operand.vmem [shape: bf16[64,128], index: 1, kind: input, shape index: {}]
  %s2 = inlined_call_operand.vmem [shape: f32[1,128], index: 2, kind: input, shape index: {}]
  %s3 = inlined_call_operand.vmem [shape: bf16[128,64], index: 3, kind: input, shape index: {}]
  %s4 = inlined_call_operand.vmem [shape: f32[1,64], index: 4, kind: input, shape index: {}]
  %s5 = inlined_call_operand.vmem [shape: bf16[256,64], index: 5, kind: output, shape index: {}]
  %s6 = sld [smem:[#allocation0]]
  $region53: #{tpu_custom_call.1} parent=0
    _
  %s8 = ssub.s32 1, %s6
  %s9 = scalar_select 0, %s8, %s6
  loop: start=0, step=1, limit=4
  $region2: #{tpu_custom_call.1} parent=0 // loop_pre_header
    _
  $region3: #{tpu_custom_call.1} parent=0 // loop_header
    %s11 = sphi 0, %s15
    %p12 = scmp.ge.s32.totalorder %s11, 4
    %s21 = sphi 0, %s23
    %s24 = sphi 0, %s21
    %s25 = sphi 0, %s24
    %s41 = sphi 0, %s25
    %s45 = sphi 0, %s45
    %s47 = sphi 0, %s45
    %s48 = sphi 0, %s47
    %s62 = sphi 0, %s48
    %s66 = sphi 0, %s66
    %s68 = sphi 0, %s66
    %s69 = sphi 0, %s68
    %s83 = sphi 0, %s69
    %s87 = sphi 0, %s87
    %s89 = sphi 0, %s87
    %s90 = sphi 0, %s89
    %s104 = sphi 0, %s90
    %s108 = sphi 0, %s108
    %s110 = sphi 0, %s108
    %s111 = sphi 0, %s110
    %s125 = sphi 0, %s111
    %s131 = sphi 0, %s133
    %s134 = sphi 0, %s131
    %s135 = sphi 0, %s134
    %s151 = sphi 0, %s135
  $region4: #{tpu_custom_call.1} parent=0 // loop_header_branch
    %14 = sbr.rel (%p12) target = $region8
  $region5: #{tpu_custom_call.1} parent=0 // loop_body
    %s16 = ssub.s32 %s11, 1
    %s17 = ssub.s32 %s11, 2
    %s18 = sadd.s32 %s11, 1
    %s19 = ssub.s32 %s11, %s18
    %p20 = scmp.eq.s32.totalorder %s19, 0
    %s22 = sadd.s32 %s21, 1
    %s23 = scalar_select %p20, %s21, %s22
    %p26 = pneg %p20
    %p27 = scmp.eq.s32.totalorder %s11, 1
    %p28 = por %p26, %p27
    %p29 = scmp.ne.s32.totalorder %s21, %s24
    %p30 = scmp.eq.s32.totalorder %s11, 0
    %p31 = por %p29, %p30
    %p32 = scmp.ne.s32.totalorder %s21, %s24
    %p33 = scmp.eq.s32.totalorder %s16, 1
    %p34 = por %p32, %p33
    %p35 = scmp.ne.s32.totalorder %s24, %s25
    %p36 = scmp.eq.s32.totalorder %s16, 0
    %p37 = por %p35, %p36
    %p38 = scmp.ne.s32.totalorder %s24, %s25
    %p39 = scmp.eq.s32.totalorder %s17, 1
    %p40 = por %p38, %p39
    %p42 = scmp.ne.s32.totalorder %s25, %s41
    %p43 = scmp.eq.s32.totalorder %s17, 0
    %p44 = por %p42, %p43
    %s46 = sadd.s32 %s45, 1
    %p49 = scmp.eq.s32.totalorder %s11, 1
    %p50 = scmp.ne.s32.totalorder %s45, %s47
    %p51 = scmp.eq.s32.totalorder %s11, 0
    %p52 = por %p50, %p51
    %p53 = scmp.ne.s32.totalorder %s45, %s47
    %p54 = scmp.eq.s32.totalorder %s16, 1
    %p55 = por %p53, %p54
    %p56 = scmp.ne.s32.totalorder %s47, %s48
    %p57 = scmp.eq.s32.totalorder %s16, 0
    %p58 = por %p56, %p57
    %p59 = scmp.ne.s32.totalorder %s47, %s48
    %p60 = scmp.eq.s32.totalorder %s17, 1
    %p61 = por %p59, %p60
    %p63 = scmp.ne.s32.totalorder %s48, %s62
    %p64 = scmp.eq.s32.totalorder %s17, 0
    %p65 = por %p63, %p64
    %s67 = sadd.s32 %s66, 1
    %p70 = scmp.eq.s32.totalorder %s11, 1
    %p71 = scmp.ne.s32.totalorder %s66, %s68
    %p72 = scmp.eq.s32.totalorder %s11, 0
    %p73 = por %p71, %p72
    %p74 = scmp.ne.s32.totalorder %s66, %s68
    %p75 = scmp.eq.s32.totalorder %s16, 1
    %p76 = por %p74, %p75
    %p77 = scmp.ne.s32.totalorder %s68, %s69
    %p78 = scmp.eq.s32.totalorder %s16, 0
    %p79 = por %p77, %p78
    %p80 = scmp.ne.s32.totalorder %s68, %s69
    %p81 = scmp.eq.s32.totalorder %s17, 1
    %p82 = por %p80, %p81
    %p84 = scmp.ne.s32.totalorder %s69, %s83
    %p85 = scmp.eq.s32.totalorder %s17, 0
    %p86 = por %p84, %p85
    %s88 = sadd.s32 %s87, 1
    %p91 = scmp.eq.s32.totalorder %s11, 1
    %p92 = scmp.ne.s32.totalorder %s87, %s89
    %p93 = scmp.eq.s32.totalorder %s11, 0
    %p94 = por %p92, %p93
    %p95 = scmp.ne.s32.totalorder %s87, %s89
    %p96 = scmp.eq.s32.totalorder %s16, 1
    %p97 = por %p95, %p96
    %p98 = scmp.ne.s32.totalorder %s89, %s90
    %p99 = scmp.eq.s32.totalorder %s16, 0
    %p100 = por %p98, %p99
    %p101 = scmp.ne.s32.totalorder %s89, %s90
    %p102 = scmp.eq.s32.totalorder %s17, 1
    %p103 = por %p101, %p102
    %p105 = scmp.ne.s32.totalorder %s90, %s104
    %p106 = scmp.eq.s32.totalorder %s17, 0
    %p107 = por %p105, %p106
    %s109 = sadd.s32 %s108, 1
    %p112 = scmp.eq.s32.totalorder %s11, 1
    %p113 = scmp.ne.s32.totalorder %s108, %s110
    %p114 = scmp.eq.s32.totalorder %s11, 0
    %p115 = por %p113, %p114
    %p116 = scmp.ne.s32.totalorder %s108, %s110
    %p117 = scmp.eq.s32.totalorder %s16, 1
    %p118 = por %p116, %p117
    %p119 = scmp.ne.s32.totalorder %s110, %s111
    %p120 = scmp.eq.s32.totalorder %s16, 0
    %p121 = por %p119, %p120
    %p122 = scmp.ne.s32.totalorder %s110, %s111
    %p123 = scmp.eq.s32.totalorder %s17, 1
    %p124 = por %p122, %p123
    %p126 = scmp.ne.s32.totalorder %s111, %s125
    %p127 = scmp.eq.s32.totalorder %s17, 0
    %p128 = por %p126, %p127
    %s129 = ssub.s32 %s11, %s18
    %p130 = scmp.eq.s32.totalorder %s129, 0
    %s132 = sadd.s32 %s131, 1
    %s133 = scalar_select %p130, %s131, %s132
    %p136 = pneg %p130
    %p137 = scmp.eq.s32.totalorder %s11, 1
    %p138 = por %p136, %p137
    %p139 = scmp.ne.s32.totalorder %s131, %s134
    %p140 = scmp.eq.s32.totalorder %s11, 0
    %p141 = por %p139, %p140
    %p142 = scmp.ne.s32.totalorder %s131, %s134
    %p143 = scmp.eq.s32.totalorder %s16, 1
    %p144 = por %p142, %p143
    %p145 = scmp.ne.s32.totalorder %s134, %s135
    %p146 = scmp.eq.s32.totalorder %s16, 0
    %p147 = por %p145, %p146
    %p148 = scmp.ne.s32.totalorder %s134, %s135
    %p149 = scmp.eq.s32.totalorder %s17, 1
    %p150 = por %p148, %p149
    %p152 = scmp.ne.s32.totalorder %s135, %s151
    %p153 = scmp.eq.s32.totalorder %s17, 0
    %p154 = por %p152, %p153
    %p155 = scmp.le.s32.totalorder 1, %s11
    %p156 = scmp.lt.s32.totalorder %s11, 3
    %p157 = pnand %p155, %p156
    %p158 = pneg %p157
    // Predicated region
    $region9: #{tpu_custom_call.1} parent=5 // pred_check
      _
    $region10: #{tpu_custom_call.1} parent=5 // pred_check_branch
      %160 = sbr.rel (%p157) target = $region12
    $region11: #{tpu_custom_call.1} parent=5 // pred_region
      %s161 = ssub.s32 %s11, 1
      // Predicated region
      $region13: #{tpu_custom_call.1} parent=11 // pred_check
        %p162 = pneg %p58
      $region14: #{tpu_custom_call.1} parent=11 // pred_check_branch
        %164 = sbr.rel (%p162) target = $region16
      $region15: #{tpu_custom_call.1} parent=11 // pred_region
        _
      $region16: #{tpu_custom_call.1} parent=11 // pred_fallthru
        _
      // Predicated region
      $region17: #{tpu_custom_call.1} parent=11 // pred_check
        %p165 = pneg %p79
      $region18: #{tpu_custom_call.1} parent=11 // pred_check_branch
        %167 = sbr.rel (%p165) target = $region20
      $region19: #{tpu_custom_call.1} parent=11 // pred_region
        _
      $region20: #{tpu_custom_call.1} parent=11 // pred_fallthru
        _
      // Predicated region
      $region21: #{tpu_custom_call.1} parent=11 // pred_check
        %p168 = pneg %p100
      $region22: #{tpu_custom_call.1} parent=11 // pred_check_branch
        %170 = sbr.rel (%p168) target = $region24
      $region23: #{tpu_custom_call.1} parent=11 // pred_region
        _
      $region24: #{tpu_custom_call.1} parent=11 // pred_fallthru
        _
      // Predicated region
      $region25: #{tpu_custom_call.1} parent=11 // pred_check
        %p171 = pneg %p121
      $region26: #{tpu_custom_call.1} parent=11 // pred_check_branch
        %173 = sbr.rel (%p171) target = $region28
      $region27: #{tpu_custom_call.1} parent=11 // pred_region
        _
      $region28: #{tpu_custom_call.1} parent=11 // pred_fallthru
        _
    $region12: #{tpu_custom_call.1} parent=5 // pred_fallthru
      _
    %p174 = scmp.lt.s32.totalorder %s11, 2
    // Predicated region
    $region29: #{tpu_custom_call.1} parent=5 // pred_check
      %p175 = pneg %p174
    $region30: #{tpu_custom_call.1} parent=5 // pred_check_branch
      %177 = sbr.rel (%p175) target = $region32
    $region31: #{tpu_custom_call.1} parent=5 // pred_region
      // Predicated region
      $region33: #{tpu_custom_call.1} parent=31 // pred_check
        %p178 = pneg %p31
      $region34: #{tpu_custom_call.1} parent=31 // pred_check_branch
        %180 = sbr.rel (%p178) target = $region36
      $region35: #{tpu_custom_call.1} parent=31 // pred_region
        %s181 = smul.u32 16, %s11
        %p182 = scmp.lt.s32.totalorder %s181, 31
        %s183 = scalar_select %p182, %s181, 31
        %s184 = smul.addr %s183, 4
        %s185 = scalar_lea.vmem %s0, %s184
        %s186 = smul.u32 16, %s11
      $region36: #{tpu_custom_call.1} parent=31 // pred_fallthru
        _
    $region32: #{tpu_custom_call.1} parent=5 // pred_fallthru
      _
    %p187 = scmp.le.s32.totalorder 1, %s11
    %p188 = scmp.lt.s32.totalorder %s11, 3
    %p189 = pnand %p187, %p188
    %p190 = pneg %p189
    // Predicated region
    $region37: #{tpu_custom_call.1} parent=5 // pred_check
      _
    $region38: #{tpu_custom_call.1} parent=5 // pred_check_branch
      %192 = sbr.rel (%p189) target = $region40
    $region39: #{tpu_custom_call.1} parent=5 // pred_region
      %s193 = ssub.s32 %s11, 1
      %s194 = smul.u32 16, %s16
      %p195 = scmp.lt.s32.totalorder %s194, 31
      %s196 = scalar_select %p195, %s194, 31
      %s197 = smul.addr %s196, 4
      %s198 = scalar_lea.vmem %s0, %s197
      %p199 = pneg %p37
      %p200 = pneg %p34
      %p201 = pneg %p58
      %p202 = pneg %p55
      %p203 = pneg %p79
      %p204 = pneg %p76
      %p205 = pneg %p100
      %p206 = pneg %p97
      %p207 = pneg %p121
      %p208 = pneg %p118
      %p209 = pneg %p147
      %p210 = pneg %p144
      %s211 = smul.u32 16, %s16
      %p212 = scmp.lt.s32.totalorder %s211, 31
      %s213 = scalar_select %p212, %s211, 31
      %s214 = smul.addr %s213, 4
      %s215 = scalar_lea.vmem %s5, %s214
      %s216 = smul.u32 16, %s16
      %p217 = scmp.lt.s32.totalorder %s216, 31
      %s218 = scalar_select %p217, %s216, 31
      %s219 = smul.addr %s218, 4
      %s220 = scalar_lea.vmem %s0, %s219
      %s221 = smul.u32 16, %s16
      %s222 = smul.u32 16, %s16
      %p223 = scmp.lt.s32.totalorder %s222, 31
      %s224 = scalar_select %p223, %s222, 31
      %s225 = smul.addr %s224, 4
      %s226 = scalar_lea.vmem %s5, %s225
      %s227 = smul.u32 16, %s16
      %v229 = vld [vmem:[%s220] sm:$0xf]
      %v230 = vld [vmem:[%s220 + $0x4] sm:$0xf]
      %v231 = vld [vmem:[%s220 + $0x8] sm:$0xf]
      %v232 = vld [vmem:[%s220 + $0xc] sm:$0xf]
      %v233 = vld [vmem:[%s220 + $0x10] sm:$0xf]
      %v234 = vld [vmem:[%s220 + $0x14] sm:$0xf]
      %v235 = vld [vmem:[%s220 + $0x18] sm:$0xf]
      %v236 = vld [vmem:[%s220 + $0x1c] sm:$0xf]
      %v237 = vld [vmem:[%s220 + $0x20] sm:$0xf]
      %v238 = vld [vmem:[%s220 + $0x24] sm:$0xf]
      %v239 = vld [vmem:[%s220 + $0x28] sm:$0xf]
      %v240 = vld [vmem:[%s220 + $0x2c] sm:$0xf]
      %v241 = vld [vmem:[%s220 + $0x30] sm:$0xf]
      %v242 = vld [vmem:[%s220 + $0x34] sm:$0xf]
      %v243 = vld [vmem:[%s220 + $0x38] sm:$0xf]
      %v244 = vld [vmem:[%s220 + $0x3c] sm:$0xf]
      %v245 = vld [vmem:[%s1] sm:$0xf]
      %v246 = vld [vmem:[%s1 + $0x4] sm:$0xf]
      %v247 = vld [vmem:[%s1 + $0x8] sm:$0xf]
      %v248 = vld [vmem:[%s1 + $0xc] sm:$0xf]
      %v249 = vld [vmem:[%s1 + $0x10] sm:$0xf]
      %v250 = vld [vmem:[%s1 + $0x14] sm:$0xf]
      %v251 = vld [vmem:[%s1 + $0x18] sm:$0xf]
      %v252 = vld [vmem:[%s1 + $0x1c] sm:$0xf]
      %v253 = vld [vmem:[%s2] sm:$0x1]
      %v255 = vlaneseq
      %v256 = vshrl.u32 %v255, 7
      %v257 = vsub.s32 0, %v256
      %v258 = vrot.slane %v253, %v257
      %v276 = vunpack.c.l.b16 %v229
      %v277 = vunpack.c.l.b16 %v230
      %v278 = vunpack.c.l.b16 %v231
      %v279 = vunpack.c.l.b16 %v232
      %v280 = vunpack.c.l.b16 %v233
      %v281 = vunpack.c.l.b16 %v234
      %v282 = vunpack.c.l.b16 %v235
      %v283 = vunpack.c.l.b16 %v236
      %v284 = vunpack.c.l.b16 %v237
      %v285 = vunpack.c.l.b16 %v238
      %v286 = vunpack.c.l.b16 %v239
      %v287 = vunpack.c.l.b16 %v240
      %v288 = vunpack.c.l.b16 %v241
      %v289 = vunpack.c.l.b16 %v242
      %v290 = vunpack.c.l.b16 %v243
      %v291 = vunpack.c.l.b16 %v244
      %v292 = vpack.c.b16 %v277, %v276
      %v293 = vpack.c.b16 %v279, %v278
      %v294 = vpack.c.b16 %v281, %v280
      %v295 = vpack.c.b16 %v283, %v282
      %v296 = vpack.c.b16 %v285, %v284
      %v297 = vpack.c.b16 %v287, %v286
      %v298 = vpack.c.b16 %v289, %v288
      %v299 = vpack.c.b16 %v291, %v290
      %v308 = vunpack.c.l.b16 %v245
      %v309 = vunpack.c.l.b16 %v246
      %v310 = vunpack.c.l.b16 %v247
      %v311 = vunpack.c.l.b16 %v248
      %v312 = vunpack.c.l.b16 %v249
      %v313 = vunpack.c.l.b16 %v250
      %v314 = vunpack.c.l.b16 %v251
      %v315 = vunpack.c.l.b16 %v252
      %v316 = vpack.c.b16 %v309, %v308
      %v317 = vpack.c.b16 %v311, %v310
      %v318 = vpack.c.b16 %v313, %v312
      %v319 = vpack.c.b16 %v315, %v314
      %vm324 = vcmask 523264
      %v326 = vsel %vm324, %v292, 0
      %v329 = vsel %vm324, %v293, 0
      %v332 = vsel %vm324, %v294, 0
      %v335 = vsel %vm324, %v295, 0
      %v338 = vsel %vm324, %v296, 0
      %v341 = vsel %vm324, %v297, 0
      %v344 = vsel %vm324, %v298, 0
      %v347 = vsel %vm324, %v299, 0
      %349 = vmatprep.subr.bf16.mxu0 0
      %350 = vmatpush1.bf16.msra.mxu0 0
      %351 = vmatprep.subr.bf16.mxu0 0
      %352 = vmatpush1.bf16.msra.mxu0 0
      %353 = vmatprep.subr.bf16.mxu0 0
      %354 = vmatpush1.bf16.msra.mxu0 0
      %355 = vmatprep.subr.bf16.mxu0 0
      %356 = vmatpush1.bf16.msra.mxu0 0
      %357 = vmatprep.subr.bf16.mxu0 0
      %358 = vmatpush1.bf16.msra.mxu0 %v319
      %359 = vmatprep.subr.bf16.mxu0 0
      %360 = vmatpush1.bf16.msra.mxu0 %v318
      %361 = vmatprep.subr.bf16.mxu0 0
      %362 = vmatpush1.bf16.msra.mxu0 %v317
      %363 = vmatprep.subr.bf16.mxu0 0
      %364 = vmatpush1.bf16.msra.mxu0 %v316
      %365 = vmatprep.subr.bf16.mxu0 0
      %366 = vmatpush2.bf16.msra.mxu0 0
      %367 = vmatprep.subr.bf16.mxu0 0
      %368 = vmatpush2.bf16.msra.mxu0 0
      %369 = vmatprep.subr.bf16.mxu0 0
      %370 = vmatpush2.bf16.msra.mxu0 0
      %371 = vmatprep.subr.bf16.mxu0 0
      %372 = vmatpush2.bf16.msra.mxu0 0
      %373 = vmatprep.subr.bf16.mxu0 0
      %374 = vmatpush2.bf16.msra.mxu0 0
      %375 = vmatprep.subr.bf16.mxu0 0
      %376 = vmatpush2.bf16.msra.mxu0 0
      %377 = vmatprep.subr.bf16.mxu0 0
      %378 = vmatpush2.bf16.msra.mxu0 0
      %379 = vmatprep.subr.bf16.mxu0 0
      %380 = vmatpush2.bf16.msra.mxu0 0
      %381 = vmatprep.mubr.bf16.mxu0 0
      %382 = vmatmul.mubr.bf16.gmra.mxu0 %v326
      %v383 = vpop.f32.mrf.mxu0
      %v384 = vadd.f32 %v258, %v383
      %v385 = vpop.f32.mrf.mxu0
      %v386 = vpop.f32.mrf.mxu0
      %v387 = vadd.f32 %v258, %v386
      %v388 = vpop.f32.mrf.mxu0
      %389 = vmatprep.mubr.bf16.mxu0 0
      %390 = vmatmul.mubr.bf16.gmra.mxu0 %v329
      %v391 = vpop.f32.mrf.mxu0
      %v392 = vadd.f32 %v258, %v391
      %v393 = vpop.f32.mrf.mxu0
      %v394 = vpop.f32.mrf.mxu0
      %v395 = vadd.f32 %v258, %v394
      %v396 = vpop.f32.mrf.mxu0
      %397 = vmatprep.mubr.bf16.mxu0 0
      %398 = vmatmul.mubr.bf16.gmra.mxu0 %v332
      %v399 = vpop.f32.mrf.mxu0
      %v400 = vadd.f32 %v258, %v399
      %v401 = vpop.f32.mrf.mxu0
      %v402 = vpop.f32.mrf.mxu0
      %v403 = vadd.f32 %v258, %v402
      %v404 = vpop.f32.mrf.mxu0
      %405 = vmatprep.mubr.bf16.mxu0 0
      %406 = vmatmul.mubr.bf16.gmra.mxu0 %v335
      %v407 = vpop.f32.mrf.mxu0
      %v408 = vadd.f32 %v258, %v407
      %v409 = vpop.f32.mrf.mxu0
      %v410 = vpop.f32.mrf.mxu0
      %v411 = vadd.f32 %v258, %v410
      %v412 = vpop.f32.mrf.mxu0
      %413 = vmatprep.mubr.bf16.mxu0 0
      %414 = vmatmul.mubr.bf16.gmra.mxu0 %v338
      %v415 = vpop.f32.mrf.mxu0
      %v416 = vadd.f32 %v258, %v415
      %v417 = vpop.f32.mrf.mxu0
      %v418 = vpop.f32.mrf.mxu0
      %v419 = vadd.f32 %v258, %v418
      %v420 = vpop.f32.mrf.mxu0
      %421 = vmatprep.mubr.bf16.mxu0 0
      %422 = vmatmul.mubr.bf16.gmra.mxu0 %v341
      %v423 = vpop.f32.mrf.mxu0
      %v424 = vadd.f32 %v258, %v423
      %v425 = vpop.f32.mrf.mxu0
      %v426 = vpop.f32.mrf.mxu0
      %v427 = vadd.f32 %v258, %v426
      %v428 = vpop.f32.mrf.mxu0
      %429 = vmatprep.mubr.bf16.mxu0 0
      %430 = vmatmul.mubr.bf16.gmra.mxu0 %v344
      %v431 = vpop.f32.mrf.mxu0
      %v432 = vadd.f32 %v258, %v431
      %v433 = vpop.f32.mrf.mxu0
      %v434 = vpop.f32.mrf.mxu0
      %v435 = vadd.f32 %v258, %v434
      %v436 = vpop.f32.mrf.mxu0
      %437 = vmatprep.mubr.bf16.mxu0 0
      %438 = vmatmul.mubr.bf16.gmra.mxu0 %v347
      %v439 = vpop.f32.mrf.mxu0
      %v440 = vadd.f32 %v258, %v439
      %v441 = vpop.f32.mrf.mxu0
      %v442 = vpop.f32.mrf.mxu0
      %v443 = vadd.f32 %v258, %v442
      %v444 = vpop.f32.mrf.mxu0
      %445 = vdwg.mxu0
      %v446 = vmul.f32 %v384, 0.5
      %v447 = vmul.f32 %v387, 0.5
      %v448 = vmul.f32 %v392, 0.5
      %v449 = vmul.f32 %v395, 0.5
      %v450 = vmul.f32 %v400, 0.5
      %v451 = vmul.f32 %v403, 0.5
      %v452 = vmul.f32 %v408, 0.5
      %v453 = vmul.f32 %v411, 0.5
      %v454 = vmul.f32 %v416, 0.5
      %v455 = vmul.f32 %v419, 0.5
      %v456 = vmul.f32 %v424, 0.5
      %v457 = vmul.f32 %v427, 0.5
      %v458 = vmul.f32 %v432, 0.5
      %v459 = vmul.f32 %v435, 0.5
      %v460 = vmul.f32 %v440, 0.5
      %v461 = vmul.f32 %v443, 0.5
      %v462 = vmul.f32 %v384, 0.70710677
      %v463 = vmul.f32 %v387, 0.70710677
      %v464 = vmul.f32 %v392, 0.70710677
      %v465 = vmul.f32 %v395, 0.70710677
      %v466 = vmul.f32 %v400, 0.70710677
      %v467 = vmul.f32 %v403, 0.70710677
      %v468 = vmul.f32 %v408, 0.70710677
      %v469 = vmul.f32 %v411, 0.70710677
      %v470 = vmul.f32 %v416, 0.70710677
      %v471 = vmul.f32 %v419, 0.70710677
      %v472 = vmul.f32 %v424, 0.70710677
      %v473 = vmul.f32 %v427, 0.70710677
      %v474 = vmul.f32 %v432, 0.70710677
      %v475 = vmul.f32 %v435, 0.70710677
      %v476 = vmul.f32 %v440, 0.70710677
      %v477 = vmul.f32 %v443, 0.70710677
      %v478 = verf.f32.pop %v462
      %v479 = verf.f32.pop %v463
      %v480 = verf.f32.pop %v464
      %v481 = verf.f32.pop %v465
      %v482 = verf.f32.pop %v466
      %v483 = verf.f32.pop %v467
      %v484 = verf.f32.pop %v468
      %v485 = verf.f32.pop %v469
      %v486 = verf.f32.pop %v470
      %v487 = verf.f32.pop %v471
      %v488 = verf.f32.pop %v472
      %v489 = verf.f32.pop %v473
      %v490 = verf.f32.pop %v474
      %v491 = verf.f32.pop %v475
      %v492 = verf.f32.pop %v476
      %v493 = verf.f32.pop %v477
      %v494 = vadd.f32 %v478, 1.0
      %v495 = vadd.f32 %v479, 1.0
      %v496 = vadd.f32 %v480, 1.0
      %v497 = vadd.f32 %v481, 1.0
      %v498 = vadd.f32 %v482, 1.0
      %v499 = vadd.f32 %v483, 1.0
      %v500 = vadd.f32 %v484, 1.0
      %v501 = vadd.f32 %v485, 1.0
      %v502 = vadd.f32 %v486, 1.0
      %v503 = vadd.f32 %v487, 1.0
      %v504 = vadd.f32 %v488, 1.0
      %v505 = vadd.f32 %v489, 1.0
      %v506 = vadd.f32 %v490, 1.0
      %v507 = vadd.f32 %v491, 1.0
      %v508 = vadd.f32 %v492, 1.0
      %v509 = vadd.f32 %v493, 1.0
      %v510 = vmul.f32 %v446, %v494
      %v511 = vmul.f32 %v447, %v495
      %v512 = vmul.f32 %v448, %v496
      %v513 = vmul.f32 %v449, %v497
      %v514 = vmul.f32 %v450, %v498
      %v515 = vmul.f32 %v451, %v499
      %v516 = vmul.f32 %v452, %v500
      %v517 = vmul.f32 %v453, %v501
      %v518 = vmul.f32 %v454, %v502
      %v519 = vmul.f32 %v455, %v503
      %v520 = vmul.f32 %v456, %v504
      %v521 = vmul.f32 %v457, %v505
      %v522 = vmul.f32 %v458, %v506
      %v523 = vmul.f32 %v459, %v507
      %v524 = vmul.f32 %v460, %v508
      %v525 = vmul.f32 %v461, %v509
      %v526 = vpack.c.bf16 %v511, %v510
      %v527 = vpack.c.bf16 %v513, %v512
      %v528 = vpack.c.bf16 %v515, %v514
      %v529 = vpack.c.bf16 %v517, %v516
      %v530 = vpack.c.bf16 %v519, %v518
      %v531 = vpack.c.bf16 %v521, %v520
      %v532 = vpack.c.bf16 %v523, %v522
      %v533 = vpack.c.bf16 %v525, %v524
      %v534 = vld [vmem:[%s3] sm:$0xf]
      %v535 = vld [vmem:[%s3 + $0x4] sm:$0xf]
      %v536 = vld [vmem:[%s3 + $0x8] sm:$0xf]
      %v537 = vld [vmem:[%s3 + $0xc] sm:$0xf]
      %v538 = vld [vmem:[%s3 + $0x10] sm:$0xf]
      %v539 = vld [vmem:[%s3 + $0x14] sm:$0xf]
      %v540 = vld [vmem:[%s3 + $0x18] sm:$0xf]
      %v541 = vld [vmem:[%s3 + $0x1c] sm:$0xf]
      %v542 = vld [vmem:[%s3 + $0x20] sm:$0xf]
      %v543 = vld [vmem:[%s3 + $0x24] sm:$0xf]
      %v544 = vld [vmem:[%s3 + $0x28] sm:$0xf]
      %v545 = vld [vmem:[%s3 + $0x2c] sm:$0xf]
      %v546 = vld [vmem:[%s3 + $0x30] sm:$0xf]
      %v547 = vld [vmem:[%s3 + $0x34] sm:$0xf]
      %v548 = vld [vmem:[%s3 + $0x38] sm:$0xf]
      %v549 = vld [vmem:[%s3 + $0x3c] sm:$0xf]
      %v550 = vld [vmem:[%s4] sm:$0x1]
      %v552 = vlaneseq
      %v553 = vshrl.u32 %v552, 7
      %v554 = vsub.s32 0, %v553
      %v555 = vrot.slane %v550, %v554
      %v573 = vunpack.c.l.b16 %v534
      %v574 = vunpack.c.l.b16 %v535
      %v575 = vunpack.c.l.b16 %v536
      %v576 = vunpack.c.l.b16 %v537
      %v577 = vunpack.c.l.b16 %v538
      %v578 = vunpack.c.l.b16 %v539
      %v579 = vunpack.c.l.b16 %v540
      %v580 = vunpack.c.l.b16 %v541
      %v581 = vunpack.c.l.b16 %v542
      %v582 = vunpack.c.l.b16 %v543
      %v583 = vunpack.c.l.b16 %v544
      %v584 = vunpack.c.l.b16 %v545
      %v585 = vunpack.c.l.b16 %v546
      %v586 = vunpack.c.l.b16 %v547
      %v587 = vunpack.c.l.b16 %v548
      %v588 = vunpack.c.l.b16 %v549
      %v589 = vpack.c.b16 %v574, %v573
      %v590 = vpack.c.b16 %v576, %v575
      %v591 = vpack.c.b16 %v578, %v577
      %v592 = vpack.c.b16 %v580, %v579
      %v593 = vpack.c.b16 %v582, %v581
      %v594 = vpack.c.b16 %v584, %v583
      %v595 = vpack.c.b16 %v586, %v585
      %v596 = vpack.c.b16 %v588, %v587
      %605 = vmatprep.subr.bf16.mxu0 0
      %606 = vmatpush1.bf16.msra.mxu0 %v596
      %607 = vmatprep.subr.bf16.mxu0 0
      %608 = vmatpush1.bf16.msra.mxu0 %v595
      %609 = vmatprep.subr.bf16.mxu0 0
      %610 = vmatpush1.bf16.msra.mxu0 %v594
      %611 = vmatprep.subr.bf16.mxu0 0
      %612 = vmatpush1.bf16.msra.mxu0 %v593
      %613 = vmatprep.subr.bf16.mxu0 0
      %614 = vmatpush1.bf16.msra.mxu0 %v592
      %615 = vmatprep.subr.bf16.mxu0 0
      %616 = vmatpush1.bf16.msra.mxu0 %v591
      %617 = vmatprep.subr.bf16.mxu0 0
      %618 = vmatpush1.bf16.msra.mxu0 %v590
      %619 = vmatprep.subr.bf16.mxu0 0
      %620 = vmatpush1.bf16.msra.mxu0 %v589
      %621 = vmatprep.subr.bf16.mxu0 0
      %622 = vmatpush2.bf16.msra.mxu0 0
      %623 = vmatprep.subr.bf16.mxu0 0
      %624 = vmatpush2.bf16.msra.mxu0 0
      %625 = vmatprep.subr.bf16.mxu0 0
      %626 = vmatpush2.bf16.msra.mxu0 0
      %627 = vmatprep.subr.bf16.mxu0 0
      %628 = vmatpush2.bf16.msra.mxu0 0
      %629 = vmatprep.subr.bf16.mxu0 0
      %630 = vmatpush2.bf16.msra.mxu0 0
      %631 = vmatprep.subr.bf16.mxu0 0
      %632 = vmatpush2.bf16.msra.mxu0 0
      %633 = vmatprep.subr.bf16.mxu0 0
      %634 = vmatpush2.bf16.msra.mxu0 0
      %635 = vmatprep.subr.bf16.mxu0 0
      %636 = vmatpush2.bf16.msra.mxu0 0
      %637 = vmatprep.mubr.bf16.mxu0 0
      %638 = vmatmul.mubr.bf16.gmra.mxu0 %v526
      %v639 = vpop.f32.mrf.mxu0
      %v640 = vadd.f32 %v555, %v639
      %v641 = vpop.f32.mrf.mxu0
      %v642 = vpop.f32.mrf.mxu0
      %v643 = vadd.f32 %v555, %v642
      %v644 = vpop.f32.mrf.mxu0
      %645 = vmatprep.mubr.bf16.mxu0 0
      %646 = vmatmul.mubr.bf16.gmra.mxu0 %v527
      %v647 = vpop.f32.mrf.mxu0
      %v648 = vadd.f32 %v555, %v647
      %v649 = vpop.f32.mrf.mxu0
      %v650 = vpop.f32.mrf.mxu0
      %v651 = vadd.f32 %v555, %v650
      %v652 = vpop.f32.mrf.mxu0
      %653 = vmatprep.mubr.bf16.mxu0 0
      %654 = vmatmul.mubr.bf16.gmra.mxu0 %v528
      %v655 = vpop.f32.mrf.mxu0
      %v656 = vadd.f32 %v555, %v655
      %v657 = vpop.f32.mrf.mxu0
      %v658 = vpop.f32.mrf.mxu0
      %v659 = vadd.f32 %v555, %v658
      %v660 = vpop.f32.mrf.mxu0
      %661 = vmatprep.mubr.bf16.mxu0 0
      %662 = vmatmul.mubr.bf16.gmra.mxu0 %v529
      %v663 = vpop.f32.mrf.mxu0
      %v664 = vadd.f32 %v555, %v663
      %v665 = vpop.f32.mrf.mxu0
      %v666 = vpop.f32.mrf.mxu0
      %v667 = vadd.f32 %v555, %v666
      %v668 = vpop.f32.mrf.mxu0
      %669 = vmatprep.mubr.bf16.mxu0 0
      %670 = vmatmul.mubr.bf16.gmra.mxu0 %v530
      %v671 = vpop.f32.mrf.mxu0
      %v672 = vadd.f32 %v555, %v671
      %v673 = vpop.f32.mrf.mxu0
      %v674 = vpop.f32.mrf.mxu0
      %v675 = vadd.f32 %v555, %v674
      %v676 = vpop.f32.mrf.mxu0
      %677 = vmatprep.mubr.bf16.mxu0 0
      %678 = vmatmul.mubr.bf16.gmra.mxu0 %v531
      %v679 = vpop.f32.mrf.mxu0
      %v680 = vadd.f32 %v555, %v679
      %v681 = vpop.f32.mrf.mxu0
      %v682 = vpop.f32.mrf.mxu0
      %v683 = vadd.f32 %v555, %v682
      %v684 = vpop.f32.mrf.mxu0
      %685 = vmatprep.mubr.bf16.mxu0 0
      %686 = vmatmul.mubr.bf16.gmra.mxu0 %v532
      %v687 = vpop.f32.mrf.mxu0
      %v688 = vadd.f32 %v555, %v687
      %v689 = vpop.f32.mrf.mxu0
      %v690 = vpop.f32.mrf.mxu0
      %v691 = vadd.f32 %v555, %v690
      %v692 = vpop.f32.mrf.mxu0
      %693 = vmatprep.mubr.bf16.mxu0 0
      %694 = vmatmul.mubr.bf16.gmra.mxu0 %v533
      %v695 = vpop.f32.mrf.mxu0
      %v696 = vadd.f32 %v555, %v695
      %v697 = vpop.f32.mrf.mxu0
      %v698 = vpop.f32.mrf.mxu0
      %v699 = vadd.f32 %v555, %v698
      %v700 = vpop.f32.mrf.mxu0
      %701 = vdwg.mxu0
      %v702 = vmul.f32 %v640, %v640
      %v703 = vmul.f32 %v643, %v643
      %v704 = vmul.f32 %v648, %v648
      %v705 = vmul.f32 %v651, %v651
      %v706 = vmul.f32 %v656, %v656
      %v707 = vmul.f32 %v659, %v659
      %v708 = vmul.f32 %v664, %v664
      %v709 = vmul.f32 %v667, %v667
      %v710 = vmul.f32 %v672, %v672
      %v711 = vmul.f32 %v675, %v675
      %v712 = vmul.f32 %v680, %v680
      %v713 = vmul.f32 %v683, %v683
      %v714 = vmul.f32 %v688, %v688
      %v715 = vmul.f32 %v691, %v691
      %v716 = vmul.f32 %v696, %v696
      %v717 = vmul.f32 %v699, %v699
      %v718 = vsel %vm324, %v702, 0.0
      %719 = vadd.xlane.f32.xlu0 %v718
      %v720 = vpop.xlane.xlu0 %719
      %v721 = vsel %vm324, %v703, 0.0
      %722 = vadd.xlane.f32.xlu0 %v721
      %v723 = vpop.xlane.xlu0 %722
      %v724 = vsel %vm324, %v704, 0.0
      %725 = vadd.xlane.f32.xlu0 %v724
      %v726 = vpop.xlane.xlu0 %725
      %v727 = vsel %vm324, %v705, 0.0
      %728 = vadd.xlane.f32.xlu0 %v727
      %v729 = vpop.xlane.xlu0 %728
      %v730 = vsel %vm324, %v706, 0.0
      %731 = vadd.xlane.f32.xlu0 %v730
      %v732 = vpop.xlane.xlu0 %731
      %v733 = vsel %vm324, %v707, 0.0
      %734 = vadd.xlane.f32.xlu0 %v733
      %v735 = vpop.xlane.xlu0 %734
      %v736 = vsel %vm324, %v708, 0.0
      %737 = vadd.xlane.f32.xlu0 %v736
      %v738 = vpop.xlane.xlu0 %737
      %v739 = vsel %vm324, %v709, 0.0
      %740 = vadd.xlane.f32.xlu0 %v739
      %v741 = vpop.xlane.xlu0 %740
      %v742 = vsel %vm324, %v710, 0.0
      %743 = vadd.xlane.f32.xlu0 %v742
      %v744 = vpop.xlane.xlu0 %743
      %v745 = vsel %vm324, %v711, 0.0
      %746 = vadd.xlane.f32.xlu0 %v745
      %v747 = vpop.xlane.xlu0 %746
      %v748 = vsel %vm324, %v712, 0.0
      %749 = vadd.xlane.f32.xlu0 %v748
      %v750 = vpop.xlane.xlu0 %749
      %v751 = vsel %vm324, %v713, 0.0
      %752 = vadd.xlane.f32.xlu0 %v751
      %v753 = vpop.xlane.xlu0 %752
      %v754 = vsel %vm324, %v714, 0.0
      %755 = vadd.xlane.f32.xlu0 %v754
      %v756 = vpop.xlane.xlu0 %755
      %v757 = vsel %vm324, %v715, 0.0
      %758 = vadd.xlane.f32.xlu0 %v757
      %v759 = vpop.xlane.xlu0 %758
      %v760 = vsel %vm324, %v716, 0.0
      %761 = vadd.xlane.f32.xlu0 %v760
      %v762 = vpop.xlane.xlu0 %761
      %v763 = vsel %vm324, %v717, 0.0
      %764 = vadd.xlane.f32.xlu0 %v763
      %v765 = vpop.xlane.xlu0 %764
      %v766 = vmax.f32 %v720, 1e-24
      %v767 = vmax.f32 %v723, 1e-24
      %v768 = vmax.f32 %v726, 1e-24
      %v769 = vmax.f32 %v729, 1e-24
      %v770 = vmax.f32 %v732, 1e-24
      %v771 = vmax.f32 %v735, 1e-24
      %v772 = vmax.f32 %v738, 1e-24
      %v773 = vmax.f32 %v741, 1e-24
      %v774 = vmax.f32 %v744, 1e-24
      %v775 = vmax.f32 %v747, 1e-24
      %v776 = vmax.f32 %v750, 1e-24
      %v777 = vmax.f32 %v753, 1e-24
      %v778 = vmax.f32 %v756, 1e-24
      %v779 = vmax.f32 %v759, 1e-24
      %v780 = vmax.f32 %v762, 1e-24
      %v781 = vmax.f32 %v765, 1e-24
      %v782 = vrsqrt.pop %v766
      %v783 = vrsqrt.pop %v767
      %v784 = vrsqrt.pop %v768
      %v785 = vrsqrt.pop %v769
      %v786 = vrsqrt.pop %v770
      %v787 = vrsqrt.pop %v771
      %v788 = vrsqrt.pop %v772
      %v789 = vrsqrt.pop %v773
      %v790 = vrsqrt.pop %v774
      %v791 = vrsqrt.pop %v775
      %v792 = vrsqrt.pop %v776
      %v793 = vrsqrt.pop %v777
      %v794 = vrsqrt.pop %v778
      %v795 = vrsqrt.pop %v779
      %v796 = vrsqrt.pop %v780
      %v797 = vrsqrt.pop %v781
      %v798 = vmul.f32 %v640, %v782
      %v799 = vmul.f32 %v643, %v783
      %v800 = vmul.f32 %v648, %v784
      %v801 = vmul.f32 %v651, %v785
      %v802 = vmul.f32 %v656, %v786
      %v803 = vmul.f32 %v659, %v787
      %v804 = vmul.f32 %v664, %v788
      %v805 = vmul.f32 %v667, %v789
      %v806 = vmul.f32 %v672, %v790
      %v807 = vmul.f32 %v675, %v791
      %v808 = vmul.f32 %v680, %v792
      %v809 = vmul.f32 %v683, %v793
      %v810 = vmul.f32 %v688, %v794
      %v811 = vmul.f32 %v691, %v795
      %v812 = vmul.f32 %v696, %v796
      %v813 = vmul.f32 %v699, %v797
      %v814 = vpack.c.bf16 %v799, %v798
      %v815 = vpack.c.bf16 %v801, %v800
      %v816 = vpack.c.bf16 %v803, %v802
      %v817 = vpack.c.bf16 %v805, %v804
      %v818 = vpack.c.bf16 %v807, %v806
      %v819 = vpack.c.bf16 %v809, %v808
      %v820 = vpack.c.bf16 %v811, %v810
      %v821 = vpack.c.bf16 %v813, %v812
      %v830 = vunpack.c.l.b16 %v814
      %v831 = vunpack.c.h.b16 %v814
      %v832 = vunpack.c.l.b16 %v815
      %v833 = vunpack.c.h.b16 %v815
      %v834 = vunpack.c.l.b16 %v816
      %v835 = vunpack.c.h.b16 %v816
      %v836 = vunpack.c.l.b16 %v817
      %v837 = vunpack.c.h.b16 %v817
      %v838 = vunpack.c.l.b16 %v818
      %v839 = vunpack.c.h.b16 %v818
      %v840 = vunpack.c.l.b16 %v819
      %v841 = vunpack.c.h.b16 %v819
      %v842 = vunpack.c.l.b16 %v820
      %v843 = vunpack.c.h.b16 %v820
      %v844 = vunpack.c.l.b16 %v821
      %v845 = vunpack.c.h.b16 %v821
      %v846 = vpack.c.b16 %v830, %v830
      %v847 = vpack.c.b16 %v831, %v831
      %v848 = vpack.c.b16 %v832, %v832
      %v849 = vpack.c.b16 %v833, %v833
      %v850 = vpack.c.b16 %v834, %v834
      %v851 = vpack.c.b16 %v835, %v835
      %v852 = vpack.c.b16 %v836, %v836
      %v853 = vpack.c.b16 %v837, %v837
      %v854 = vpack.c.b16 %v838, %v838
      %v855 = vpack.c.b16 %v839, %v839
      %v856 = vpack.c.b16 %v840, %v840
      %v857 = vpack.c.b16 %v841, %v841
      %v858 = vpack.c.b16 %v842, %v842
      %v859 = vpack.c.b16 %v843, %v843
      %v860 = vpack.c.b16 %v844, %v844
      %v861 = vpack.c.b16 %v845, %v845
      %vm878 = vcmask 519168
      %879 = vst.msk [vmem:[%s226] sm:$0xf] %vm878, %v846
      %880 = vst.msk [vmem:[%s226 + $0x4] sm:$0xf] %vm878, %v847
      %881 = vst.msk [vmem:[%s226 + $0x8] sm:$0xf] %vm878, %v848
      %882 = vst.msk [vmem:[%s226 + $0xc] sm:$0xf] %vm878, %v849
      %883 = vst.msk [vmem:[%s226 + $0x10] sm:$0xf] %vm878, %v850
      %884 = vst.msk [vmem:[%s226 + $0x14] sm:$0xf] %vm878, %v851
      %885 = vst.msk [vmem:[%s226 + $0x18] sm:$0xf] %vm878, %v852
      %886 = vst.msk [vmem:[%s226 + $0x1c] sm:$0xf] %vm878, %v853
      %887 = vst.msk [vmem:[%s226 + $0x20] sm:$0xf] %vm878, %v854
      %888 = vst.msk [vmem:[%s226 + $0x24] sm:$0xf] %vm878, %v855
      %889 = vst.msk [vmem:[%s226 + $0x28] sm:$0xf] %vm878, %v856
      %890 = vst.msk [vmem:[%s226 + $0x2c] sm:$0xf] %vm878, %v857
      %891 = vst.msk [vmem:[%s226 + $0x30] sm:$0xf] %vm878, %v858
      %892 = vst.msk [vmem:[%s226 + $0x34] sm:$0xf] %vm878, %v859
      %893 = vst.msk [vmem:[%s226 + $0x38] sm:$0xf] %vm878, %v860
      %894 = vst.msk [vmem:[%s226 + $0x3c] sm:$0xf] %vm878, %v861
      %s895 = smul.u32 16, %s16
      %p896 = scmp.lt.s32.totalorder %s895, 31
      %s897 = scalar_select %p896, %s895, 31
      %s898 = smul.addr %s897, 4
      %s899 = scalar_lea.vmem %s5, %s898
      // Predicated region
      $region41: #{tpu_custom_call.1} parent=39 // pred_check
        %p900 = pneg %p144
      $region42: #{tpu_custom_call.1} parent=39 // pred_check_branch
        %902 = sbr.rel (%p900) target = $region44
      $region43: #{tpu_custom_call.1} parent=39 // pred_region
        %s903 = smul.u32 16, %s16
      $region44: #{tpu_custom_call.1} parent=39 // pred_fallthru
        _
    $region40: #{tpu_custom_call.1} parent=5 // pred_fallthru
      _
    %p904 = scmp.le.s32.totalorder 2, %s11
    // Predicated region
    $region45: #{tpu_custom_call.1} parent=5 // pred_check
      %p905 = pneg %p904
    $region46: #{tpu_custom_call.1} parent=5 // pred_check_branch
      %907 = sbr.rel (%p905) target = $region48
    $region47: #{tpu_custom_call.1} parent=5 // pred_region
      %s908 = ssub.s32 %s11, 2
      // Predicated region
      $region49: #{tpu_custom_call.1} parent=47 // pred_check
        %p909 = pneg %p150
      $region50: #{tpu_custom_call.1} parent=47 // pred_check_branch
        %911 = sbr.rel (%p909) target = $region52
      $region51: #{tpu_custom_call.1} parent=47 // pred_region
        %s912 = smul.u32 16, %s17
        %p913 = scmp.lt.s32.totalorder %s912, 31
        %s914 = scalar_select %p913, %s912, 31
        %s915 = smul.addr %s914, 4
        %s916 = scalar_lea.vmem %s5, %s915
      $region52: #{tpu_custom_call.1} parent=47 // pred_fallthru
        _
    $region48: #{tpu_custom_call.1} parent=5 // pred_fallthru
      _
  $region6: #{tpu_custom_call.1} parent=0 // loop_footer
    %s15 = sadd.s32 1, %s11
  $region7: #{tpu_custom_call.1} parent=0 // loop_footer_branch
    %10 = sbr.rel target = $region3
  $region8: #{tpu_custom_call.1} parent=0 // loop_exit
    _

</llo_original>
